<compile_context>
chip_gen: v6e
topology: v6e:2x2x1
jax: 0.10.0
libtpu: 0.0.40
codegen_flags: <defaults>
</compile_context>

<pallas_src>
import functools

import jax
import jax.numpy as jnp
import numpy as np
from jax import lax
from jax.experimental import pallas as pl
from jax.experimental.pallas import tpu as pltpu

UNROLL = 8  # unrolled steps per fori_loop iteration (one (8,4S) vreg group)


def _hydro_lstm_kernel(x_ref, w2_ref, wrec_ref, bias4_ref, h0_ref, c0_ref,
                       hc_out_ref, state_scr, pre_scr, *, unroll):
    S = h0_ref.shape[1]
    t_chunk = x_ref.shape[0]

    # Chunk 0: seed the carried (h, c) state (scratch persists across chunks).
    @pl.when(pl.program_id(0) == 0)
    def _():
        state_scr[0:1, :] = h0_ref[...]
        state_scr[1:2, :] = c0_ref[...]

    # Hoisted input projection + bias for the whole chunk: one MXU matmul
    # (optionally bf16 inputs, f32 accumulation).  Off the serial h-chain.
    pre_scr[...] = (
        jnp.dot(x_ref[...], w2_ref[...], preferred_element_type=jnp.float32)
        + bias4_ref[...]
    )

    # Per-gate recurrent weights: static lane slices, hoisted once per chunk.
    wrec = wrec_ref[...]                       # (1, 4S) packed [f | i | o | g]
    wf = wrec[:, 0 * S:1 * S]
    wi = wrec[:, 1 * S:2 * S]
    wo = wrec[:, 2 * S:3 * S]
    wg = wrec[:, 3 * S:4 * S]

    h = state_scr[0:1, :]
    c = state_scr[1:2, :]

    def group(gidx, carry):
        h, c = carry
        base = pl.multiple_of(gidx * unroll, unroll)
        # One aligned (UNROLL, 4S) load per group (full sublane tile) instead
        # of a dynamic (1, 4S) row load per step.
        pre_blk = pre_scr[pl.ds(base, unroll), :]
        for j in range(unroll):
            pf = pre_blk[j:j + 1, 0 * S:1 * S]
            pi = pre_blk[j:j + 1, 1 * S:2 * S]
            po = pre_blk[j:j + 1, 2 * S:3 * S]
            pg = pre_blk[j:j + 1, 3 * S:4 * S]
            # Per-gate (1,S) FMAs: no lane replication of h on the dep chain.
            f = jax.nn.sigmoid(pf + wf * h)
            i = jax.nn.sigmoid(pi + wi * h)
            o = jax.nn.sigmoid(po + wo * h)
            g = jnp.tanh(pg + wg * h)
            c = f * c + i * g                   # (1, S)
            h = o * jnp.tanh(c)                 # (1, S)
            # Fused h|c writeback: one lane-dense (1, 2S) store per step
            # (off the serial chain; split back into h/c in the wrapper).
            hc_out_ref[pl.ds(base + j, 1), :] = jnp.concatenate([h, c], axis=1)
        return (h, c)

    h, c = lax.fori_loop(0, t_chunk // unroll, group, (h, c))

    # Persist the carry for the next chunk.
    state_scr[0:1, :] = h
    state_scr[1:2, :] = c


def hydro_lstm_forward(x, h0, c0, weight_input, weight_recur, bias,
                       *, max_chunk=512, use_bf16_projection=False):
    """HYDRO_LSTM forward (state_size > 1 branch).

    x: (T, K) f32, h0/c0: (1, S), weight_input: (S, 4, K),
    weight_recur/bias: (4, S).  Returns (h_n, c_n), each (T+1, S).
    """
    T, K = x.shape
    S = h0.shape[1]
    assert weight_input.shape == (S, 4, K)
    # TODO(synk): the state_size == 1 branch (weight_input of shape
    # (4, input_size)) is not implemented; only state_size > 1 is handled.

    def _round_up(a, b):
        return ((a + b - 1) // b) * b

    # T-chunk: multiple of UNROLL, capped so one chunk comfortably fits VMEM
    # even on v7x (64 MiB physical).  Pad T to a whole number of chunks;
    # padded steps are computed on zero rows and sliced off in the wrapper.
    t_chunk = min(_round_up(max(T, 1), UNROLL), _round_up(max_chunk, UNROLL))
    t_pad = _round_up(max(T, 1), t_chunk)
    num_chunks = t_pad // t_chunk

    # Parameter repack: (S,4,K) -> (K,4,S) -> (K, 4S); lane index = a*S + s
    # with a in gate order f,i,o,g (matches torch gates.chunk(4, dim=0)).
    w2 = jnp.transpose(weight_input, (2, 1, 0)).reshape(K, 4 * S)
    wrec4 = weight_recur.reshape(1, 4 * S).astype(jnp.float32)
    bias4 = bias.reshape(1, 4 * S).astype(jnp.float32)

    xp = x if t_pad == T else jnp.pad(x, ((0, t_pad - T), (0, 0)))
    if use_bf16_projection:
        # bf16 projection inputs (f32 accumulation): fewer MXU passes and half
        # the x/w2 DMA bytes on v6e/v7x.  Recurrence math stays in f32.
        xp = xp.astype(jnp.bfloat16)
        w2 = w2.astype(jnp.bfloat16)
    else:
        xp = xp.astype(jnp.float32)
        w2 = w2.astype(jnp.float32)

    # VMEM budget (double-buffered x/out chunks + pre-activation scratch),
    # explicit because v5e's scoped default is only 16 MiB; capped at 48 MiB
    # to stay safe on v7x's 64 MiB physical VMEM.
    x_item = jnp.dtype(xp.dtype).itemsize
    x_bytes = t_chunk * K * x_item
    out_bytes = t_chunk * 2 * S * 4
    pre_bytes = t_chunk * 4 * S * 4
    param_bytes = K * 4 * S * x_item + 3 * 4 * S * 4 + 2 * S * 4
    vmem_limit = int(min(max(2 * (x_bytes + out_bytes) + pre_bytes
                             + param_bytes + (2 << 20), 16 << 20), 48 << 20))

    cost = pl.CostEstimate(
        flops=int(t_pad * (2 * K * 4 * S + 14 * S)),
        transcendentals=int(t_pad * 5 * S),
        bytes_accessed=int(num_chunks * x_bytes + K * 4 * S * x_item
                           + 4 * 4 * S * 4 + t_pad * 2 * S * 4),
    )

    grid_spec = pltpu.PrefetchScalarGridSpec(
        num_scalar_prefetch=0,
        grid=(num_chunks,),
        in_specs=[
            pl.BlockSpec((t_chunk, K), lambda i: (i, 0)),      # x chunk
            pl.BlockSpec((K, 4 * S), lambda i: (0, 0)),        # packed W_in
            pl.BlockSpec((1, 4 * S), lambda i: (0, 0)),        # packed W_rec
            pl.BlockSpec((1, 4 * S), lambda i: (0, 0)),        # packed bias
            pl.BlockSpec((1, S), lambda i: (0, 0)),            # h0
            pl.BlockSpec((1, S), lambda i: (0, 0)),            # c0
        ],
        out_specs=pl.BlockSpec((t_chunk, 2 * S), lambda i: (i, 0)),  # [h | c]
        scratch_shapes=[
            pltpu.VMEM((2, S), jnp.float32),                   # carried (h, c)
            pltpu.VMEM((t_chunk, 4 * S), jnp.float32),         # chunk pre-acts
        ],
    )

    hc = pl.pallas_call(
        functools.partial(_hydro_lstm_kernel, unroll=UNROLL),
        out_shape=jax.ShapeDtypeStruct((t_pad, 2 * S), jnp.float32),
        grid_spec=grid_spec,
        compiler_params=pltpu.CompilerParams(
            # Serial recurrence across chunks.  A batch of independent
            # sequences would add a leading "parallel" axis (v7x 2-TC win);
            # a single sequence is inherently serial.
            dimension_semantics=("arbitrary",),
            vmem_limit_bytes=vmem_limit,
        ),
        cost_estimate=cost,
    )(xp, w2, wrec4, bias4, h0.astype(jnp.float32), c0.astype(jnp.float32))

    hc = hc[:T]
    h_n = jnp.concatenate([h0, hc[:, :S]], axis=0)   # torch: cat((h_0, ...))
    c_n = jnp.concatenate([c0, hc[:, S:]], axis=0)
    return h_n, c_n


def hydro_lstm_ref(x, h0, c0, weight_input, weight_recur, bias):
    """Pure-JAX reference matching the PyTorch loop (state_size > 1 branch)."""
    T = x.shape[0]
    h, c = h0[0], c0[0]
    hs, cs = [h0[0]], [c0[0]]
    for t in range(T):
        sum1 = jnp.einsum('sak,k->as', weight_input, x[t])   # (4, S)
        gates = bias + weight_recur * h[None, :] + sum1
        f = jax.nn.sigmoid(gates[0])
        i = jax.nn.sigmoid(gates[1])
        o = jax.nn.sigmoid(gates[2])
        g = jnp.tanh(gates[3])
        c = f * c + i * g
        h = o * jnp.tanh(c)
        hs.append(h)
        cs.append(c)
    return jnp.stack(hs), jnp.stack(cs)


if __name__ == "__main__":
    input_size, state_size, seq_len = 16, 32, 8

    key = jax.random.PRNGKey(0)
    k1, k2, k3, k4, k5, k6 = jax.random.split(key, 6)

    def xavier_uniform(k, shape, fan_in, fan_out):
        a = (6.0 / (fan_in + fan_out)) ** 0.5
        return jax.random.uniform(k, shape, jnp.float32, -a, a)

    # Parameter shapes from HYDRO_LSTM.__init__ (state_size > 1 branch).
    weight_input = xavier_uniform(k1, (state_size, 4, input_size),
                                  input_size, 4)
    weight_recur = xavier_uniform(k2, (4, state_size), state_size, 4)
    bias = xavier_uniform(k3, (4, state_size), state_size, 4)

    x = jax.random.normal(k4, (seq_len, input_size), jnp.float32)
    h0 = jax.random.normal(k5, (1, state_size), jnp.float32)
    c0 = jax.random.normal(k6, (1, state_size), jnp.float32)

    h_ref, c_ref = hydro_lstm_ref(x, h0, c0, weight_input, weight_recur, bias)

    # 1) Default f32 path.
    h_n, c_n = hydro_lstm_forward(x, h0, c0, weight_input, weight_recur, bias)
    jax.block_until_ready((h_n, c_n))
    assert h_n.shape == (seq_len + 1, state_size)
    assert c_n.shape == (seq_len + 1, state_size)
    assert np.allclose(np.asarray(h_n), np.asarray(h_ref), atol=1e-5)
    assert np.allclose(np.asarray(c_n), np.asarray(c_ref), atol=1e-5)

    # 2) Longer non-multiple-of-chunk sequence: exercises the T-chunked grid,
    #    the persistent carried-state scratch, and tail padding.
    T2 = 40
    x2 = jax.random.normal(jax.random.PRNGKey(1), (T2, input_size), jnp.float32)
    h_n2, c_n2 = hydro_lstm_forward(x2, h0, c0, weight_input, weight_recur,
                                    bias, max_chunk=16)
    jax.block_until_ready((h_n2, c_n2))
    h_ref2, c_ref2 = hydro_lstm_ref(x2, h0, c0, weight_input, weight_recur,
                                    bias)
    assert h_n2.shape == (T2 + 1, state_size)
    assert np.allclose(np.asarray(h_n2), np.asarray(h_ref2), atol=1e-5)
    assert np.allclose(np.asarray(c_n2), np.asarray(c_ref2), atol=1e-5)

    # 3) bf16 input-projection variant (v6e/v7x MXU optimization); looser tol
    #    since the projection inputs are rounded to bf16.
    h_nb, c_nb = hydro_lstm_forward(x, h0, c0, weight_input, weight_recur,
                                    bias, use_bf16_projection=True)
    jax.block_until_ready((h_nb, c_nb))
    assert np.allclose(np.asarray(h_nb), np.asarray(h_ref), atol=5e-2)
    assert np.allclose(np.asarray(c_nb), np.asarray(c_ref), atol=5e-2)

    print("KERNEL_OK")
</pallas_src>

<mosaic_0001>
module attributes {stable_mosaic.version = 11 : i64} {
  func.func @_hydro_lstm_kernel(%arg0: i32, %arg1: memref<8x16xf32, #tpu.memory_space<vmem>>, %arg2: memref<16x128xf32, #tpu.memory_space<vmem>>, %arg3: memref<1x128xf32, #tpu.memory_space<vmem>>, %arg4: memref<1x128xf32, #tpu.memory_space<vmem>>, %arg5: memref<1x32xf32, #tpu.memory_space<vmem>>, %arg6: memref<1x32xf32, #tpu.memory_space<vmem>>, %arg7: memref<8x64xf32, #tpu.memory_space<vmem>>, %arg8: memref<2x32xf32, #tpu.memory_space<vmem>>, %arg9: memref<8x128xf32, #tpu.memory_space<vmem>>) attributes {dimension_semantics = [#tpu.dimension_semantics<arbitrary>], iteration_bounds = array<i64: 1>, scalar_prefetch = 0 : i64, scratch_operands = 2 : i64, tpu.core_type = #tpu.core_type<tc>, window_params = [{transform_indices = @transform_0, window_bounds = array<i64: 8, 16>}, {pipeline_mode = #tpu.pipeline_mode<synchronous>, transform_indices = @transform_1, window_bounds = array<i64: 16, 128>}, {pipeline_mode = #tpu.pipeline_mode<synchronous>, transform_indices = @transform_2, window_bounds = array<i64: 1, 128>}, {pipeline_mode = #tpu.pipeline_mode<synchronous>, transform_indices = @transform_3, window_bounds = array<i64: 1, 128>}, {pipeline_mode = #tpu.pipeline_mode<synchronous>, transform_indices = @transform_4, window_bounds = array<i64: 1, 32>}, {pipeline_mode = #tpu.pipeline_mode<synchronous>, transform_indices = @transform_5, window_bounds = array<i64: 1, 32>}, {transform_indices = @transform_6, window_bounds = array<i64: 8, 64>}]} {
    %c0_i32 = arith.constant 0 : i32
    %0 = arith.cmpi eq, %arg0, %c0_i32 : i32
    %1 = arith.extui %0 : i1 to i32
    %c0_i32_0 = arith.constant 0 : i32
    %2 = arith.cmpi ne, %1, %c0_i32_0 : i32
    scf.if %2 {
      %c0_53 = arith.constant 0 : index
      %c0_54 = arith.constant 0 : index
      %319 = vector.load %arg5[%c0_53, %c0_54] : memref<1x32xf32, #tpu.memory_space<vmem>>, vector<1x32xf32>
      %c0_55 = arith.constant 0 : index
      %c0_56 = arith.constant 0 : index
      %320 = vector.load %arg8[%c0_55, %c0_56] : memref<2x32xf32, #tpu.memory_space<vmem>>, vector<1x32xf32>
      tpu.vector_store %arg8[%c0_55, %c0_56], %319 {strides = array<i32>} : memref<2x32xf32, #tpu.memory_space<vmem>>, vector<1x32xf32>,
      %c0_57 = arith.constant 0 : index
      %c0_58 = arith.constant 0 : index
      %321 = vector.load %arg6[%c0_57, %c0_58] : memref<1x32xf32, #tpu.memory_space<vmem>>, vector<1x32xf32>
      %c1_59 = arith.constant 1 : index
      %c0_60 = arith.constant 0 : index
      %322 = vector.load %arg8[%c1_59, %c0_60] : memref<2x32xf32, #tpu.memory_space<vmem>>, vector<1x32xf32>
      tpu.vector_store %arg8[%c1_59, %c0_60], %321 {strides = array<i32>} : memref<2x32xf32, #tpu.memory_space<vmem>>, vector<1x32xf32>,
    } else {
    }
    %c0 = arith.constant 0 : index
    %c0_1 = arith.constant 0 : index
    %3 = vector.load %arg1[%c0, %c0_1] : memref<8x16xf32, #tpu.memory_space<vmem>>, vector<8x16xf32>
    %c0_2 = arith.constant 0 : index
    %c0_3 = arith.constant 0 : index
    %4 = vector.load %arg2[%c0_2, %c0_3] : memref<16x128xf32, #tpu.memory_space<vmem>>, vector<16x128xf32>
    %cst = arith.constant dense<0.000000e+00> : vector<8x128xf32>
    %5 = tpu.matmul %3, %4, %cst {dimension_numbers = #tpu.dot_dimension_numbers<[1], [0], [0], [1], [0, 0, 1, 1], [], []>} : vector<8x16xf32>, vector<16x128xf32>, vector<8x128xf32> -> vector<8x128xf32>
    %c0_4 = arith.constant 0 : index
    %c0_5 = arith.constant 0 : index
    %6 = vector.load %arg4[%c0_4, %c0_5] : memref<1x128xf32, #tpu.memory_space<vmem>>, vector<1x128xf32>
    %7 = vector.broadcast %6 : vector<1x128xf32> to vector<8x128xf32>
    %8 = arith.addf %5, %7 : vector<8x128xf32>
    %c0_6 = arith.constant 0 : index
    %c0_7 = arith.constant 0 : index
    %9 = vector.load %arg9[%c0_6, %c0_7] : memref<8x128xf32, #tpu.memory_space<vmem>>, vector<8x128xf32>
    tpu.vector_store %arg9[%c0_6, %c0_7], %8 {strides = array<i32>} : memref<8x128xf32, #tpu.memory_space<vmem>>, vector<8x128xf32>,
    %c0_8 = arith.constant 0 : index
    %c0_9 = arith.constant 0 : index
    %10 = vector.load %arg3[%c0_8, %c0_9] : memref<1x128xf32, #tpu.memory_space<vmem>>, vector<1x128xf32>
    %11 = vector.extract_strided_slice %10 {offsets = [0, 0], sizes = [1, 32], strides = [1, 1]} : vector<1x128xf32> to vector<1x32xf32>
    %12 = vector.extract_strided_slice %10 {offsets = [0, 32], sizes = [1, 32], strides = [1, 1]} : vector<1x128xf32> to vector<1x32xf32>
    %13 = vector.extract_strided_slice %10 {offsets = [0, 64], sizes = [1, 32], strides = [1, 1]} : vector<1x128xf32> to vector<1x32xf32>
    %14 = vector.extract_strided_slice %10 {offsets = [0, 96], sizes = [1, 32], strides = [1, 1]} : vector<1x128xf32> to vector<1x32xf32>
    %c0_10 = arith.constant 0 : index
    %c0_11 = arith.constant 0 : index
    %15 = vector.load %arg8[%c0_10, %c0_11] : memref<2x32xf32, #tpu.memory_space<vmem>>, vector<1x32xf32>
    %c1 = arith.constant 1 : index
    %c0_12 = arith.constant 0 : index
    %16 = vector.load %arg8[%c1, %c0_12] : memref<2x32xf32, #tpu.memory_space<vmem>>, vector<1x32xf32>
    %c0_i32_13 = arith.constant 0 : i32
    %c8_i32 = arith.constant 8 : i32
    %17 = arith.muli %c0_i32_13, %c8_i32 : i32
    %18 = tpu.assume_multiple %17, 8 : i32
    %19 = arith.index_cast %18 : i32 to index
    %c0_14 = arith.constant 0 : index
    %20 = vector.load %arg9[%19, %c0_14] : memref<8x128xf32, #tpu.memory_space<vmem>>, vector<8x128xf32>
    %21 = vector.extract_strided_slice %20 {offsets = [0, 0], sizes = [1, 32], strides = [1, 1]} : vector<8x128xf32> to vector<1x32xf32>
    %22 = vector.extract_strided_slice %20 {offsets = [0, 32], sizes = [1, 32], strides = [1, 1]} : vector<8x128xf32> to vector<1x32xf32>
    %23 = vector.extract_strided_slice %20 {offsets = [0, 64], sizes = [1, 32], strides = [1, 1]} : vector<8x128xf32> to vector<1x32xf32>
    %24 = vector.extract_strided_slice %20 {offsets = [0, 96], sizes = [1, 32], strides = [1, 1]} : vector<8x128xf32> to vector<1x32xf32>
    %25 = arith.mulf %11, %15 : vector<1x32xf32>
    %26 = arith.addf %21, %25 : vector<1x32xf32>
    %27 = arith.negf %26 : vector<1x32xf32>
    %28 = math.exp %27 : vector<1x32xf32>
    %cst_15 = arith.constant 1.000000e+00 : f32
    %29 = vector.broadcast %cst_15 : f32 to vector<1x32xf32>
    %30 = arith.addf %29, %28 : vector<1x32xf32>
    %31 = arith.divf %29, %30 : vector<1x32xf32>
    %32 = arith.mulf %12, %15 : vector<1x32xf32>
    %33 = arith.addf %22, %32 : vector<1x32xf32>
    %34 = arith.negf %33 : vector<1x32xf32>
    %35 = math.exp %34 : vector<1x32xf32>
    %cst_16 = arith.constant 1.000000e+00 : f32
    %36 = vector.broadcast %cst_16 : f32 to vector<1x32xf32>
    %37 = arith.addf %36, %35 : vector<1x32xf32>
    %38 = arith.divf %36, %37 : vector<1x32xf32>
    %39 = arith.mulf %13, %15 : vector<1x32xf32>
    %40 = arith.addf %23, %39 : vector<1x32xf32>
    %41 = arith.negf %40 : vector<1x32xf32>
    %42 = math.exp %41 : vector<1x32xf32>
    %cst_17 = arith.constant 1.000000e+00 : f32
    %43 = vector.broadcast %cst_17 : f32 to vector<1x32xf32>
    %44 = arith.addf %43, %42 : vector<1x32xf32>
    %45 = arith.divf %43, %44 : vector<1x32xf32>
    %46 = arith.mulf %14, %15 : vector<1x32xf32>
    %47 = arith.addf %24, %46 : vector<1x32xf32>
    %48 = math.tanh %47 : vector<1x32xf32>
    %49 = arith.mulf %31, %16 : vector<1x32xf32>
    %50 = arith.mulf %38, %48 : vector<1x32xf32>
    %51 = arith.addf %49, %50 : vector<1x32xf32>
    %52 = math.tanh %51 : vector<1x32xf32>
    %53 = arith.mulf %45, %52 : vector<1x32xf32>
    %54 = tpu.concatenate %53, %51 in 1 : vector<1x32xf32>, vector<1x32xf32> -> vector<1x64xf32>
    %c0_i32_18 = arith.constant 0 : i32
    %55 = arith.addi %18, %c0_i32_18 : i32
    %56 = arith.index_cast %55 : i32 to index
    %c0_19 = arith.constant 0 : index
    %57 = vector.load %arg7[%56, %c0_19] : memref<8x64xf32, #tpu.memory_space<vmem>>, vector<1x64xf32>
    tpu.vector_store %arg7[%56, %c0_19], %54 {strides = array<i32>} : memref<8x64xf32, #tpu.memory_space<vmem>>, vector<1x64xf32>,
    %58 = vector.extract_strided_slice %20 {offsets = [1, 0], sizes = [1, 32], strides = [1, 1]} : vector<8x128xf32> to vector<1x32xf32>
    %59 = vector.extract_strided_slice %20 {offsets = [1, 32], sizes = [1, 32], strides = [1, 1]} : vector<8x128xf32> to vector<1x32xf32>
    %60 = vector.extract_strided_slice %20 {offsets = [1, 64], sizes = [1, 32], strides = [1, 1]} : vector<8x128xf32> to vector<1x32xf32>
    %61 = vector.extract_strided_slice %20 {offsets = [1, 96], sizes = [1, 32], strides = [1, 1]} : vector<8x128xf32> to vector<1x32xf32>
    %62 = arith.mulf %11, %53 : vector<1x32xf32>
    %63 = arith.addf %58, %62 : vector<1x32xf32>
    %64 = arith.negf %63 : vector<1x32xf32>
    %65 = math.exp %64 : vector<1x32xf32>
    %cst_20 = arith.constant 1.000000e+00 : f32
    %66 = vector.broadcast %cst_20 : f32 to vector<1x32xf32>
    %67 = arith.addf %66, %65 : vector<1x32xf32>
    %68 = arith.divf %66, %67 : vector<1x32xf32>
    %69 = arith.mulf %12, %53 : vector<1x32xf32>
    %70 = arith.addf %59, %69 : vector<1x32xf32>
    %71 = arith.negf %70 : vector<1x32xf32>
    %72 = math.exp %71 : vector<1x32xf32>
    %cst_21 = arith.constant 1.000000e+00 : f32
    %73 = vector.broadcast %cst_21 : f32 to vector<1x32xf32>
    %74 = arith.addf %73, %72 : vector<1x32xf32>
    %75 = arith.divf %73, %74 : vector<1x32xf32>
    %76 = arith.mulf %13, %53 : vector<1x32xf32>
    %77 = arith.addf %60, %76 : vector<1x32xf32>
    %78 = arith.negf %77 : vector<1x32xf32>
    %79 = math.exp %78 : vector<1x32xf32>
    %cst_22 = arith.constant 1.000000e+00 : f32
    %80 = vector.broadcast %cst_22 : f32 to vector<1x32xf32>
    %81 = arith.addf %80, %79 : vector<1x32xf32>
    %82 = arith.divf %80, %81 : vector<1x32xf32>
    %83 = arith.mulf %14, %53 : vector<1x32xf32>
    %84 = arith.addf %61, %83 : vector<1x32xf32>
    %85 = math.tanh %84 : vector<1x32xf32>
    %86 = arith.mulf %68, %51 : vector<1x32xf32>
    %87 = arith.mulf %75, %85 : vector<1x32xf32>
    %88 = arith.addf %86, %87 : vector<1x32xf32>
    %89 = math.tanh %88 : vector<1x32xf32>
    %90 = arith.mulf %82, %89 : vector<1x32xf32>
    %91 = tpu.concatenate %90, %88 in 1 : vector<1x32xf32>, vector<1x32xf32> -> vector<1x64xf32>
    %c1_i32 = arith.constant 1 : i32
    %92 = arith.addi %18, %c1_i32 : i32
    %93 = arith.index_cast %92 : i32 to index
    %c0_23 = arith.constant 0 : index
    %94 = vector.load %arg7[%93, %c0_23] : memref<8x64xf32, #tpu.memory_space<vmem>>, vector<1x64xf32>
    tpu.vector_store %arg7[%93, %c0_23], %91 {strides = array<i32>} : memref<8x64xf32, #tpu.memory_space<vmem>>, vector<1x64xf32>,
    %95 = vector.extract_strided_slice %20 {offsets = [2, 0], sizes = [1, 32], strides = [1, 1]} : vector<8x128xf32> to vector<1x32xf32>
    %96 = vector.extract_strided_slice %20 {offsets = [2, 32], sizes = [1, 32], strides = [1, 1]} : vector<8x128xf32> to vector<1x32xf32>
    %97 = vector.extract_strided_slice %20 {offsets = [2, 64], sizes = [1, 32], strides = [1, 1]} : vector<8x128xf32> to vector<1x32xf32>
    %98 = vector.extract_strided_slice %20 {offsets = [2, 96], sizes = [1, 32], strides = [1, 1]} : vector<8x128xf32> to vector<1x32xf32>
    %99 = arith.mulf %11, %90 : vector<1x32xf32>
    %100 = arith.addf %95, %99 : vector<1x32xf32>
    %101 = arith.negf %100 : vector<1x32xf32>
    %102 = math.exp %101 : vector<1x32xf32>
    %cst_24 = arith.constant 1.000000e+00 : f32
    %103 = vector.broadcast %cst_24 : f32 to vector<1x32xf32>
    %104 = arith.addf %103, %102 : vector<1x32xf32>
    %105 = arith.divf %103, %104 : vector<1x32xf32>
    %106 = arith.mulf %12, %90 : vector<1x32xf32>
    %107 = arith.addf %96, %106 : vector<1x32xf32>
    %108 = arith.negf %107 : vector<1x32xf32>
    %109 = math.exp %108 : vector<1x32xf32>
    %cst_25 = arith.constant 1.000000e+00 : f32
    %110 = vector.broadcast %cst_25 : f32 to vector<1x32xf32>
    %111 = arith.addf %110, %109 : vector<1x32xf32>
    %112 = arith.divf %110, %111 : vector<1x32xf32>
    %113 = arith.mulf %13, %90 : vector<1x32xf32>
    %114 = arith.addf %97, %113 : vector<1x32xf32>
    %115 = arith.negf %114 : vector<1x32xf32>
    %116 = math.exp %115 : vector<1x32xf32>
    %cst_26 = arith.constant 1.000000e+00 : f32
    %117 = vector.broadcast %cst_26 : f32 to vector<1x32xf32>
    %118 = arith.addf %117, %116 : vector<1x32xf32>
    %119 = arith.divf %117, %118 : vector<1x32xf32>
    %120 = arith.mulf %14, %90 : vector<1x32xf32>
    %121 = arith.addf %98, %120 : vector<1x32xf32>
    %122 = math.tanh %121 : vector<1x32xf32>
    %123 = arith.mulf %105, %88 : vector<1x32xf32>
    %124 = arith.mulf %112, %122 : vector<1x32xf32>
    %125 = arith.addf %123, %124 : vector<1x32xf32>
    %126 = math.tanh %125 : vector<1x32xf32>
    %127 = arith.mulf %119, %126 : vector<1x32xf32>
    %128 = tpu.concatenate %127, %125 in 1 : vector<1x32xf32>, vector<1x32xf32> -> vector<1x64xf32>
    %c2_i32 = arith.constant 2 : i32
    %129 = arith.addi %18, %c2_i32 : i32
    %130 = arith.index_cast %129 : i32 to index
    %c0_27 = arith.constant 0 : index
    %131 = vector.load %arg7[%130, %c0_27] : memref<8x64xf32, #tpu.memory_space<vmem>>, vector<1x64xf32>
    tpu.vector_store %arg7[%130, %c0_27], %128 {strides = array<i32>} : memref<8x64xf32, #tpu.memory_space<vmem>>, vector<1x64xf32>,
    %132 = vector.extract_strided_slice %20 {offsets = [3, 0], sizes = [1, 32], strides = [1, 1]} : vector<8x128xf32> to vector<1x32xf32>
    %133 = vector.extract_strided_slice %20 {offsets = [3, 32], sizes = [1, 32], strides = [1, 1]} : vector<8x128xf32> to vector<1x32xf32>
    %134 = vector.extract_strided_slice %20 {offsets = [3, 64], sizes = [1, 32], strides = [1, 1]} : vector<8x128xf32> to vector<1x32xf32>
    %135 = vector.extract_strided_slice %20 {offsets = [3, 96], sizes = [1, 32], strides = [1, 1]} : vector<8x128xf32> to vector<1x32xf32>
    %136 = arith.mulf %11, %127 : vector<1x32xf32>
    %137 = arith.addf %132, %136 : vector<1x32xf32>
    %138 = arith.negf %137 : vector<1x32xf32>
    %139 = math.exp %138 : vector<1x32xf32>
    %cst_28 = arith.constant 1.000000e+00 : f32
    %140 = vector.broadcast %cst_28 : f32 to vector<1x32xf32>
    %141 = arith.addf %140, %139 : vector<1x32xf32>
    %142 = arith.divf %140, %141 : vector<1x32xf32>
    %143 = arith.mulf %12, %127 : vector<1x32xf32>
    %144 = arith.addf %133, %143 : vector<1x32xf32>
    %145 = arith.negf %144 : vector<1x32xf32>
    %146 = math.exp %145 : vector<1x32xf32>
    %cst_29 = arith.constant 1.000000e+00 : f32
    %147 = vector.broadcast %cst_29 : f32 to vector<1x32xf32>
    %148 = arith.addf %147, %146 : vector<1x32xf32>
    %149 = arith.divf %147, %148 : vector<1x32xf32>
    %150 = arith.mulf %13, %127 : vector<1x32xf32>
    %151 = arith.addf %134, %150 : vector<1x32xf32>
    %152 = arith.negf %151 : vector<1x32xf32>
    %153 = math.exp %152 : vector<1x32xf32>
    %cst_30 = arith.constant 1.000000e+00 : f32
    %154 = vector.broadcast %cst_30 : f32 to vector<1x32xf32>
    %155 = arith.addf %154, %153 : vector<1x32xf32>
    %156 = arith.divf %154, %155 : vector<1x32xf32>
    %157 = arith.mulf %14, %127 : vector<1x32xf32>
    %158 = arith.addf %135, %157 : vector<1x32xf32>
    %159 = math.tanh %158 : vector<1x32xf32>
    %160 = arith.mulf %142, %125 : vector<1x32xf32>
    %161 = arith.mulf %149, %159 : vector<1x32xf32>
    %162 = arith.addf %160, %161 : vector<1x32xf32>
    %163 = math.tanh %162 : vector<1x32xf32>
    %164 = arith.mulf %156, %163 : vector<1x32xf32>
    %165 = tpu.concatenate %164, %162 in 1 : vector<1x32xf32>, vector<1x32xf32> -> vector<1x64xf32>
    %c3_i32 = arith.constant 3 : i32
    %166 = arith.addi %18, %c3_i32 : i32
    %167 = arith.index_cast %166 : i32 to index
    %c0_31 = arith.constant 0 : index
    %168 = vector.load %arg7[%167, %c0_31] : memref<8x64xf32, #tpu.memory_space<vmem>>, vector<1x64xf32>
    tpu.vector_store %arg7[%167, %c0_31], %165 {strides = array<i32>} : memref<8x64xf32, #tpu.memory_space<vmem>>, vector<1x64xf32>,
    %169 = vector.extract_strided_slice %20 {offsets = [4, 0], sizes = [1, 32], strides = [1, 1]} : vector<8x128xf32> to vector<1x32xf32>
    %170 = vector.extract_strided_slice %20 {offsets = [4, 32], sizes = [1, 32], strides = [1, 1]} : vector<8x128xf32> to vector<1x32xf32>
    %171 = vector.extract_strided_slice %20 {offsets = [4, 64], sizes = [1, 32], strides = [1, 1]} : vector<8x128xf32> to vector<1x32xf32>
    %172 = vector.extract_strided_slice %20 {offsets = [4, 96], sizes = [1, 32], strides = [1, 1]} : vector<8x128xf32> to vector<1x32xf32>
    %173 = arith.mulf %11, %164 : vector<1x32xf32>
    %174 = arith.addf %169, %173 : vector<1x32xf32>
    %175 = arith.negf %174 : vector<1x32xf32>
    %176 = math.exp %175 : vector<1x32xf32>
    %cst_32 = arith.constant 1.000000e+00 : f32
    %177 = vector.broadcast %cst_32 : f32 to vector<1x32xf32>
    %178 = arith.addf %177, %176 : vector<1x32xf32>
    %179 = arith.divf %177, %178 : vector<1x32xf32>
    %180 = arith.mulf %12, %164 : vector<1x32xf32>
    %181 = arith.addf %170, %180 : vector<1x32xf32>
    %182 = arith.negf %181 : vector<1x32xf32>
    %183 = math.exp %182 : vector<1x32xf32>
    %cst_33 = arith.constant 1.000000e+00 : f32
    %184 = vector.broadcast %cst_33 : f32 to vector<1x32xf32>
    %185 = arith.addf %184, %183 : vector<1x32xf32>
    %186 = arith.divf %184, %185 : vector<1x32xf32>
    %187 = arith.mulf %13, %164 : vector<1x32xf32>
    %188 = arith.addf %171, %187 : vector<1x32xf32>
    %189 = arith.negf %188 : vector<1x32xf32>
    %190 = math.exp %189 : vector<1x32xf32>
    %cst_34 = arith.constant 1.000000e+00 : f32
    %191 = vector.broadcast %cst_34 : f32 to vector<1x32xf32>
    %192 = arith.addf %191, %190 : vector<1x32xf32>
    %193 = arith.divf %191, %192 : vector<1x32xf32>
    %194 = arith.mulf %14, %164 : vector<1x32xf32>
    %195 = arith.addf %172, %194 : vector<1x32xf32>
    %196 = math.tanh %195 : vector<1x32xf32>
    %197 = arith.mulf %179, %162 : vector<1x32xf32>
    %198 = arith.mulf %186, %196 : vector<1x32xf32>
    %199 = arith.addf %197, %198 : vector<1x32xf32>
    %200 = math.tanh %199 : vector<1x32xf32>
    %201 = arith.mulf %193, %200 : vector<1x32xf32>
    %202 = tpu.concatenate %201, %199 in 1 : vector<1x32xf32>, vector<1x32xf32> -> vector<1x64xf32>
    %c4_i32 = arith.constant 4 : i32
    %203 = arith.addi %18, %c4_i32 : i32
    %204 = arith.index_cast %203 : i32 to index
    %c0_35 = arith.constant 0 : index
    %205 = vector.load %arg7[%204, %c0_35] : memref<8x64xf32, #tpu.memory_space<vmem>>, vector<1x64xf32>
    tpu.vector_store %arg7[%204, %c0_35], %202 {strides = array<i32>} : memref<8x64xf32, #tpu.memory_space<vmem>>, vector<1x64xf32>,
    %206 = vector.extract_strided_slice %20 {offsets = [5, 0], sizes = [1, 32], strides = [1, 1]} : vector<8x128xf32> to vector<1x32xf32>
    %207 = vector.extract_strided_slice %20 {offsets = [5, 32], sizes = [1, 32], strides = [1, 1]} : vector<8x128xf32> to vector<1x32xf32>
    %208 = vector.extract_strided_slice %20 {offsets = [5, 64], sizes = [1, 32], strides = [1, 1]} : vector<8x128xf32> to vector<1x32xf32>
    %209 = vector.extract_strided_slice %20 {offsets = [5, 96], sizes = [1, 32], strides = [1, 1]} : vector<8x128xf32> to vector<1x32xf32>
    %210 = arith.mulf %11, %201 : vector<1x32xf32>
    %211 = arith.addf %206, %210 : vector<1x32xf32>
    %212 = arith.negf %211 : vector<1x32xf32>
    %213 = math.exp %212 : vector<1x32xf32>
    %cst_36 = arith.constant 1.000000e+00 : f32
    %214 = vector.broadcast %cst_36 : f32 to vector<1x32xf32>
    %215 = arith.addf %214, %213 : vector<1x32xf32>
    %216 = arith.divf %214, %215 : vector<1x32xf32>
    %217 = arith.mulf %12, %201 : vector<1x32xf32>
    %218 = arith.addf %207, %217 : vector<1x32xf32>
    %219 = arith.negf %218 : vector<1x32xf32>
    %220 = math.exp %219 : vector<1x32xf32>
    %cst_37 = arith.constant 1.000000e+00 : f32
    %221 = vector.broadcast %cst_37 : f32 to vector<1x32xf32>
    %222 = arith.addf %221, %220 : vector<1x32xf32>
    %223 = arith.divf %221, %222 : vector<1x32xf32>
    %224 = arith.mulf %13, %201 : vector<1x32xf32>
    %225 = arith.addf %208, %224 : vector<1x32xf32>
    %226 = arith.negf %225 : vector<1x32xf32>
    %227 = math.exp %226 : vector<1x32xf32>
    %cst_38 = arith.constant 1.000000e+00 : f32
    %228 = vector.broadcast %cst_38 : f32 to vector<1x32xf32>
    %229 = arith.addf %228, %227 : vector<1x32xf32>
    %230 = arith.divf %228, %229 : vector<1x32xf32>
    %231 = arith.mulf %14, %201 : vector<1x32xf32>
    %232 = arith.addf %209, %231 : vector<1x32xf32>
    %233 = math.tanh %232 : vector<1x32xf32>
    %234 = arith.mulf %216, %199 : vector<1x32xf32>
    %235 = arith.mulf %223, %233 : vector<1x32xf32>
    %236 = arith.addf %234, %235 : vector<1x32xf32>
    %237 = math.tanh %236 : vector<1x32xf32>
    %238 = arith.mulf %230, %237 : vector<1x32xf32>
    %239 = tpu.concatenate %238, %236 in 1 : vector<1x32xf32>, vector<1x32xf32> -> vector<1x64xf32>
    %c5_i32 = arith.constant 5 : i32
    %240 = arith.addi %18, %c5_i32 : i32
    %241 = arith.index_cast %240 : i32 to index
    %c0_39 = arith.constant 0 : index
    %242 = vector.load %arg7[%241, %c0_39] : memref<8x64xf32, #tpu.memory_space<vmem>>, vector<1x64xf32>
    tpu.vector_store %arg7[%241, %c0_39], %239 {strides = array<i32>} : memref<8x64xf32, #tpu.memory_space<vmem>>, vector<1x64xf32>,
    %243 = vector.extract_strided_slice %20 {offsets = [6, 0], sizes = [1, 32], strides = [1, 1]} : vector<8x128xf32> to vector<1x32xf32>
    %244 = vector.extract_strided_slice %20 {offsets = [6, 32], sizes = [1, 32], strides = [1, 1]} : vector<8x128xf32> to vector<1x32xf32>
    %245 = vector.extract_strided_slice %20 {offsets = [6, 64], sizes = [1, 32], strides = [1, 1]} : vector<8x128xf32> to vector<1x32xf32>
    %246 = vector.extract_strided_slice %20 {offsets = [6, 96], sizes = [1, 32], strides = [1, 1]} : vector<8x128xf32> to vector<1x32xf32>
    %247 = arith.mulf %11, %238 : vector<1x32xf32>
    %248 = arith.addf %243, %247 : vector<1x32xf32>
    %249 = arith.negf %248 : vector<1x32xf32>
    %250 = math.exp %249 : vector<1x32xf32>
    %cst_40 = arith.constant 1.000000e+00 : f32
    %251 = vector.broadcast %cst_40 : f32 to vector<1x32xf32>
    %252 = arith.addf %251, %250 : vector<1x32xf32>
    %253 = arith.divf %251, %252 : vector<1x32xf32>
    %254 = arith.mulf %12, %238 : vector<1x32xf32>
    %255 = arith.addf %244, %254 : vector<1x32xf32>
    %256 = arith.negf %255 : vector<1x32xf32>
    %257 = math.exp %256 : vector<1x32xf32>
    %cst_41 = arith.constant 1.000000e+00 : f32
    %258 = vector.broadcast %cst_41 : f32 to vector<1x32xf32>
    %259 = arith.addf %258, %257 : vector<1x32xf32>
    %260 = arith.divf %258, %259 : vector<1x32xf32>
    %261 = arith.mulf %13, %238 : vector<1x32xf32>
    %262 = arith.addf %245, %261 : vector<1x32xf32>
    %263 = arith.negf %262 : vector<1x32xf32>
    %264 = math.exp %263 : vector<1x32xf32>
    %cst_42 = arith.constant 1.000000e+00 : f32
    %265 = vector.broadcast %cst_42 : f32 to vector<1x32xf32>
    %266 = arith.addf %265, %264 : vector<1x32xf32>
    %267 = arith.divf %265, %266 : vector<1x32xf32>
    %268 = arith.mulf %14, %238 : vector<1x32xf32>
    %269 = arith.addf %246, %268 : vector<1x32xf32>
    %270 = math.tanh %269 : vector<1x32xf32>
    %271 = arith.mulf %253, %236 : vector<1x32xf32>
    %272 = arith.mulf %260, %270 : vector<1x32xf32>
    %273 = arith.addf %271, %272 : vector<1x32xf32>
    %274 = math.tanh %273 : vector<1x32xf32>
    %275 = arith.mulf %267, %274 : vector<1x32xf32>
    %276 = tpu.concatenate %275, %273 in 1 : vector<1x32xf32>, vector<1x32xf32> -> vector<1x64xf32>
    %c6_i32 = arith.constant 6 : i32
    %277 = arith.addi %18, %c6_i32 : i32
    %278 = arith.index_cast %277 : i32 to index
    %c0_43 = arith.constant 0 : index
    %279 = vector.load %arg7[%278, %c0_43] : memref<8x64xf32, #tpu.memory_space<vmem>>, vector<1x64xf32>
    tpu.vector_store %arg7[%278, %c0_43], %276 {strides = array<i32>} : memref<8x64xf32, #tpu.memory_space<vmem>>, vector<1x64xf32>,
    %280 = vector.extract_strided_slice %20 {offsets = [7, 0], sizes = [1, 32], strides = [1, 1]} : vector<8x128xf32> to vector<1x32xf32>
    %281 = vector.extract_strided_slice %20 {offsets = [7, 32], sizes = [1, 32], strides = [1, 1]} : vector<8x128xf32> to vector<1x32xf32>
    %282 = vector.extract_strided_slice %20 {offsets = [7, 64], sizes = [1, 32], strides = [1, 1]} : vector<8x128xf32> to vector<1x32xf32>
    %283 = vector.extract_strided_slice %20 {offsets = [7, 96], sizes = [1, 32], strides = [1, 1]} : vector<8x128xf32> to vector<1x32xf32>
    %284 = arith.mulf %11, %275 : vector<1x32xf32>
    %285 = arith.addf %280, %284 : vector<1x32xf32>
    %286 = arith.negf %285 : vector<1x32xf32>
    %287 = math.exp %286 : vector<1x32xf32>
    %cst_44 = arith.constant 1.000000e+00 : f32
    %288 = vector.broadcast %cst_44 : f32 to vector<1x32xf32>
    %289 = arith.addf %288, %287 : vector<1x32xf32>
    %290 = arith.divf %288, %289 : vector<1x32xf32>
    %291 = arith.mulf %12, %275 : vector<1x32xf32>
    %292 = arith.addf %281, %291 : vector<1x32xf32>
    %293 = arith.negf %292 : vector<1x32xf32>
    %294 = math.exp %293 : vector<1x32xf32>
    %cst_45 = arith.constant 1.000000e+00 : f32
    %295 = vector.broadcast %cst_45 : f32 to vector<1x32xf32>
    %296 = arith.addf %295, %294 : vector<1x32xf32>
    %297 = arith.divf %295, %296 : vector<1x32xf32>
    %298 = arith.mulf %13, %275 : vector<1x32xf32>
    %299 = arith.addf %282, %298 : vector<1x32xf32>
    %300 = arith.negf %299 : vector<1x32xf32>
    %301 = math.exp %300 : vector<1x32xf32>
    %cst_46 = arith.constant 1.000000e+00 : f32
    %302 = vector.broadcast %cst_46 : f32 to vector<1x32xf32>
    %303 = arith.addf %302, %301 : vector<1x32xf32>
    %304 = arith.divf %302, %303 : vector<1x32xf32>
    %305 = arith.mulf %14, %275 : vector<1x32xf32>
    %306 = arith.addf %283, %305 : vector<1x32xf32>
    %307 = math.tanh %306 : vector<1x32xf32>
    %308 = arith.mulf %290, %273 : vector<1x32xf32>
    %309 = arith.mulf %297, %307 : vector<1x32xf32>
    %310 = arith.addf %308, %309 : vector<1x32xf32>
    %311 = math.tanh %310 : vector<1x32xf32>
    %312 = arith.mulf %304, %311 : vector<1x32xf32>
    %313 = tpu.concatenate %312, %310 in 1 : vector<1x32xf32>, vector<1x32xf32> -> vector<1x64xf32>
    %c7_i32 = arith.constant 7 : i32
    %314 = arith.addi %18, %c7_i32 : i32
    %315 = arith.index_cast %314 : i32 to index
    %c0_47 = arith.constant 0 : index
    %316 = vector.load %arg7[%315, %c0_47] : memref<8x64xf32, #tpu.memory_space<vmem>>, vector<1x64xf32>
    tpu.vector_store %arg7[%315, %c0_47], %313 {strides = array<i32>} : memref<8x64xf32, #tpu.memory_space<vmem>>, vector<1x64xf32>,
    %c1_i32_48 = arith.constant 1 : i32
    %c0_49 = arith.constant 0 : index
    %c0_50 = arith.constant 0 : index
    %317 = vector.load %arg8[%c0_49, %c0_50] : memref<2x32xf32, #tpu.memory_space<vmem>>, vector<1x32xf32>
    tpu.vector_store %arg8[%c0_49, %c0_50], %312 {strides = array<i32>} : memref<2x32xf32, #tpu.memory_space<vmem>>, vector<1x32xf32>,
    %c1_51 = arith.constant 1 : index
    %c0_52 = arith.constant 0 : index
    %318 = vector.load %arg8[%c1_51, %c0_52] : memref<2x32xf32, #tpu.memory_space<vmem>>, vector<1x32xf32>
    tpu.vector_store %arg8[%c1_51, %c0_52], %310 {strides = array<i32>} : memref<2x32xf32, #tpu.memory_space<vmem>>, vector<1x32xf32>,
    return
  }
  func.func @transform_0(%arg0: i32) -> (i32, i32) {
    %c0_i32 = arith.constant 0 : i32
    %c0_i32_0 = arith.constant 0 : i32
    return %arg0, %c0_i32 : i32, i32
  }
  func.func @transform_1(%arg0: i32) -> (i32, i32) {
    %c0_i32 = arith.constant 0 : i32
    %c0_i32_0 = arith.constant 0 : i32
    %c0_i32_1 = arith.constant 0 : i32
    return %c0_i32, %c0_i32_0 : i32, i32
  }
  func.func @transform_2(%arg0: i32) -> (i32, i32) {
    %c0_i32 = arith.constant 0 : i32
    %c0_i32_0 = arith.constant 0 : i32
    %c0_i32_1 = arith.constant 0 : i32
    return %c0_i32, %c0_i32_0 : i32, i32
  }
  func.func @transform_3(%arg0: i32) -> (i32, i32) {
    %c0_i32 = arith.constant 0 : i32
    %c0_i32_0 = arith.constant 0 : i32
    %c0_i32_1 = arith.constant 0 : i32
    return %c0_i32, %c0_i32_0 : i32, i32
  }
  func.func @transform_4(%arg0: i32) -> (i32, i32) {
    %c0_i32 = arith.constant 0 : i32
    %c0_i32_0 = arith.constant 0 : i32
    %c0_i32_1 = arith.constant 0 : i32
    return %c0_i32, %c0_i32_0 : i32, i32
  }
  func.func @transform_5(%arg0: i32) -> (i32, i32) {
    %c0_i32 = arith.constant 0 : i32
    %c0_i32_0 = arith.constant 0 : i32
    %c0_i32_1 = arith.constant 0 : i32
    return %c0_i32, %c0_i32_0 : i32, i32
  }
  func.func @transform_6(%arg0: i32) -> (i32, i32) {
    %c0_i32 = arith.constant 0 : i32
    %c0_i32_0 = arith.constant 0 : i32
    return %arg0, %c0_i32 : i32, i32
  }
}

</mosaic_0001>

<llo_original>
// kernel: tpu_custom_call.1
$region0: #{tpu_custom_call.1}
  #allocation0 [shape = 'u32[]', space=smem, size = 0x4, offset = 0x4, fixed_abs, tag = 'smem constant byte address 0x4 - core index']
  #allocation1 [shape = 'u32[144,128]{1,0:T(1,128)}', space=vmem, size = 0x12000, scoped, tag = 'internal scratch']
  #allocation2 [shape = 'f32[2,32]{1,0:T(2,128)}', space=vmem, size = 0x400, scoped, tag = 'scratch operand']
  #allocation3 [shape = 'f32[8,128]{1,0:T(8,128)}', space=vmem, size = 0x1000, scoped, tag = 'scratch operand']
  %s0 = inlined_call_operand.hbm [shape: f32[8,16], index: 0, kind: input, shape index: {}]
  %s1 = inlined_call_operand.hbm [shape: f32[16,128], index: 1, kind: input, shape index: {}]
  %s2 = inlined_call_operand.vmem [shape: f32[1,128], index: 2, kind: input, shape index: {}]
  %s3 = inlined_call_operand.vmem [shape: f32[1,128], index: 3, kind: input, shape index: {}]
  %s4 = inlined_call_operand.vmem [shape: f32[1,32], index: 4, kind: input, shape index: {}]
  %s5 = inlined_call_operand.vmem [shape: f32[1,32], index: 5, kind: input, shape index: {}]
  %s6 = inlined_call_operand.hbm [shape: f32[8,64], index: 6, kind: output, shape index: {}]
  %s7 = sld [smem:[#allocation0]]
  $region46: #{tpu_custom_call.1} parent=0
    _
  %s9 = ssub.s32 1, %s7
  %s10 = scalar_select 0, %s9, %s7
  $region1: #{tpu_custom_call.1} parent=0
    #allocation4 [shape = 'u8[4096]{0}', space=vmem, size = 0x1000, scoped, tag = 'input window, operand 0, single buffered']
    #allocation5 [shape = 's32[1]{0}', space=sflag, size = 0x4, scoped, tag = 'scoped memory for tpu_custom_call.1']
    #allocation6 [shape = 's32[1]{0}', space=sflag, size = 0x4, scoped, tag = 'scoped memory for tpu_custom_call.1']
    #allocation7 [shape = 'u8[8192]{0}', space=vmem, size = 0x2000, scoped, tag = 'input window, operand 1, single buffered']
    #allocation8 [shape = 's32[1]{0}', space=sflag, size = 0x4, scoped, tag = 'scoped memory for tpu_custom_call.1']
    #allocation9 [shape = 'u8[4096]{0}', space=vmem, size = 0x1000, scoped, tag = 'output window, operand 0, single buffered']
    %11 = vsyncpa [#allocation5], 0
    %12 = vsyncpa [#allocation8], 0
    %13 = vsyncpa [#allocation6], 0
    // Predicated region
    $region2: #{tpu_custom_call.1} parent=1 // pred_check
      _
    $region3: #{tpu_custom_call.1} parent=1 // pred_check_branch
      %15 = sbr.rel (0) target = $region5
    $region4: #{tpu_custom_call.1} parent=1 // pred_region
      %s17 = ssub.s32 128, 128
      %18 = vsyncadd [#allocation5], %s17
      %s20 = sshll.u32 [#allocation4], 4
      %s21 = int_to_ptr.vmem [resolvable:$true] %s20
      %23 = dma.hbm_to_vmem [thread:$0]  %s0, 128, %s21, [#allocation5]
    $region5: #{tpu_custom_call.1} parent=1 // pred_fallthru
      _
    // Predicated region
    $region6: #{tpu_custom_call.1} parent=1 // pred_check
      _
    $region7: #{tpu_custom_call.1} parent=1 // pred_check_branch
      %25 = sbr.rel (0) target = $region9
    $region8: #{tpu_custom_call.1} parent=1 // pred_region
      %s27 = ssub.s32 256, 256
      %28 = vsyncadd [#allocation8], %s27
      %s29 = sshll.u32 [#allocation7], 4
      %s30 = int_to_ptr.vmem [resolvable:$true] %s29
      %35 = dma.hbm_to_vmem [thread:$0]  %s1, 256, %s30, [#allocation8], 128, 128, 8
    $region9: #{tpu_custom_call.1} parent=1 // pred_fallthru
      _
    // Predicated region
    $region10: #{tpu_custom_call.1} parent=1 // pred_check
      _
    $region11: #{tpu_custom_call.1} parent=1 // pred_check_branch
      %37 = sbr.rel (0) target = $region13
    $region12: #{tpu_custom_call.1} parent=1 // pred_region
      _
    $region13: #{tpu_custom_call.1} parent=1 // pred_fallthru
      _
    // Predicated region
    $region14: #{tpu_custom_call.1} parent=1 // pred_check
      _
    $region15: #{tpu_custom_call.1} parent=1 // pred_check_branch
      %39 = sbr.rel (0) target = $region17
    $region16: #{tpu_custom_call.1} parent=1 // pred_region
      _
    $region17: #{tpu_custom_call.1} parent=1 // pred_fallthru
      _
    // Predicated region
    $region18: #{tpu_custom_call.1} parent=1 // pred_check
      _
    $region19: #{tpu_custom_call.1} parent=1 // pred_check_branch
      %41 = sbr.rel (0) target = $region21
    $region20: #{tpu_custom_call.1} parent=1 // pred_region
      _
    $region21: #{tpu_custom_call.1} parent=1 // pred_fallthru
      _
    // Predicated region
    $region22: #{tpu_custom_call.1} parent=1 // pred_check
      _
    $region23: #{tpu_custom_call.1} parent=1 // pred_check_branch
      %43 = sbr.rel (0) target = $region25
    $region24: #{tpu_custom_call.1} parent=1 // pred_region
      _
    $region25: #{tpu_custom_call.1} parent=1 // pred_fallthru
      _
    // Predicated region
    $region26: #{tpu_custom_call.1} parent=1 // pred_check
      _
    $region27: #{tpu_custom_call.1} parent=1 // pred_check_branch
      %45 = sbr.rel (0) target = $region29
    $region28: #{tpu_custom_call.1} parent=1 // pred_region
      %46 = dma.done [#allocation5], 128
    $region29: #{tpu_custom_call.1} parent=1 // pred_fallthru
      _
    // Predicated region
    $region30: #{tpu_custom_call.1} parent=1 // pred_check
      _
    $region31: #{tpu_custom_call.1} parent=1 // pred_check_branch
      %48 = sbr.rel (0) target = $region33
    $region32: #{tpu_custom_call.1} parent=1 // pred_region
      %49 = dma.done [#allocation8], 256
    $region33: #{tpu_custom_call.1} parent=1 // pred_fallthru
      _
    %p50 = scmp.eq.s32.totalorder 0, 0
    // Predicated region
    $region34: #{tpu_custom_call.1} parent=1 // pred_check
      %p51 = pneg %p50
    $region35: #{tpu_custom_call.1} parent=1 // pred_check_branch
      %53 = sbr.rel (%p51) target = $region37
    $region36: #{tpu_custom_call.1} parent=1 // pred_region
      %v54 = vld [vmem:[%s4] sm:$0x1]
      %vm55 = vcmask 253952
      %56 = vst.msk [vmem:[#allocation2] sm:$0x1] %vm55, %v54
      %v57 = vld [vmem:[%s5] sm:$0x1]
      %58 = vst.msk [vmem:[#allocation2 + $0x1] sm:$0x1] %vm55, %v57
    $region37: #{tpu_custom_call.1} parent=1 // pred_fallthru
      _
    %v59 = vld [vmem:[#allocation4] sm:$0xff]
    %v60 = vld [vmem:[#allocation7] sm:$0xff]
    %v61 = vld [vmem:[#allocation7 + $0x8] sm:$0xff]
    %v62 = vld [vmem:[%s3] sm:$0x1]
    %v64 = vlaneseq
    %v65 = vshrl.u32 %v64, 7
    %v66 = vsub.s32 0, %v65
    %v67 = vrot.slane %v62, %v66
    %vm69 = vcmask 130048
    %v71 = vsel %vm69, %v59, 0
    %73 = vmatprep.subr.mxu0 0.0
    %74 = vmatpush1.msra.mxu0 0.0
    %75 = vmatprep.subr.mxu0 0.0
    %76 = vmatpush1.msra.mxu0 0.0
    %77 = vmatprep.subr.mxu0 0.0
    %78 = vmatpush1.msra.mxu0 0.0
    %79 = vmatprep.subr.mxu0 0.0
    %80 = vmatpush1.msra.mxu0 0.0
    %81 = vmatprep.subr.mxu0 0.0
    %82 = vmatpush1.msra.mxu0 0.0
    %83 = vmatprep.subr.mxu0 0.0
    %84 = vmatpush1.msra.mxu0 0.0
    %85 = vmatprep.subr.mxu0 0.0
    %86 = vmatpush1.msra.mxu0 0.0
    %87 = vmatprep.subr.mxu0 0.0
    %88 = vmatpush1.msra.mxu0 0.0
    %89 = vmatprep.subr.mxu0 0.0
    %90 = vmatpush1.msra.mxu0 0.0
    %91 = vmatprep.subr.mxu0 0.0
    %92 = vmatpush1.msra.mxu0 0.0
    %93 = vmatprep.subr.mxu0 0.0
    %94 = vmatpush1.msra.mxu0 0.0
    %95 = vmatprep.subr.mxu0 0.0
    %96 = vmatpush1.msra.mxu0 0.0
    %97 = vmatprep.subr.mxu0 0.0
    %98 = vmatpush1.msra.mxu0 0.0
    %99 = vmatprep.subr.mxu0 0.0
    %100 = vmatpush1.msra.mxu0 0.0
    %101 = vmatprep.subr.mxu0 0.0
    %102 = vmatpush1.msra.mxu0 %v61
    %103 = vmatprep.subr.mxu0 0.0
    %104 = vmatpush1.msra.mxu0 %v60
    %105 = vmatprep.subr.mxu0 0.0
    %106 = vmatpush2.msra.mxu0 0.0
    %107 = vmatprep.subr.mxu0 0.0
    %108 = vmatpush2.msra.mxu0 0.0
    %109 = vmatprep.subr.mxu0 0.0
    %110 = vmatpush2.msra.mxu0 0.0
    %111 = vmatprep.subr.mxu0 0.0
    %112 = vmatpush2.msra.mxu0 0.0
    %113 = vmatprep.subr.mxu0 0.0
    %114 = vmatpush2.msra.mxu0 0.0
    %115 = vmatprep.subr.mxu0 0.0
    %116 = vmatpush2.msra.mxu0 0.0
    %117 = vmatprep.subr.mxu0 0.0
    %118 = vmatpush2.msra.mxu0 0.0
    %119 = vmatprep.subr.mxu0 0.0
    %120 = vmatpush2.msra.mxu0 0.0
    %121 = vmatprep.subr.mxu0 0.0
    %122 = vmatpush2.msra.mxu0 0.0
    %123 = vmatprep.subr.mxu0 0.0
    %124 = vmatpush2.msra.mxu0 0.0
    %125 = vmatprep.subr.mxu0 0.0
    %126 = vmatpush2.msra.mxu0 0.0
    %127 = vmatprep.subr.mxu0 0.0
    %128 = vmatpush2.msra.mxu0 0.0
    %129 = vmatprep.subr.mxu0 0.0
    %130 = vmatpush2.msra.mxu0 0.0
    %131 = vmatprep.subr.mxu0 0.0
    %132 = vmatpush2.msra.mxu0 0.0
    %133 = vmatprep.subr.mxu0 0.0
    %134 = vmatpush2.msra.mxu0 0.0
    %135 = vmatprep.subr.mxu0 0.0
    %136 = vmatpush2.msra.mxu0 0.0
    %137 = vmatprep.mubr.f32.mxu0 0.0
    %138 = vmatmul.mubr.f32.gmra.mxu0 %v71
    %v139 = vpop.f32.mrf.mxu0
    %v140 = vadd.f32 %v67, %v139
    %v141 = vpop.f32.mrf.mxu0
    %142 = vdwg.mxu0
    %143 = vst [vmem:[#allocation3] sm:$0xff] %v140
    %v144 = vld [vmem:[%s2] sm:$0x1]
    %v145 = vld [vmem:[#allocation2] sm:$0x1]
    %v146 = vld [vmem:[#allocation2 + $0x1] sm:$0x1]
    %v147 = vld [vmem:[#allocation3] sm:$0xff]
    %v148 = vmul.f32 %v144, %v145
    %v149 = vadd.f32 %v147, %v148
    %v150 = vxor.u32 %v149, 2147483648
    %v151 = vmul.f32 %v150, 1.442695
    %v152 = vpow.pop %v151
    %v153 = vadd.f32 %v152, 1.0
    %v154 = vrcp.pop %v153
    %v155 = vmul.f32 1.0, %v154
    %v158 = vunpack.c.l.s4 1966171168
    %v159 = vunpack.c.0.s8 %v158
    %v160 = vlaneseq
    %v161 = vshrl.u32 %v160, 7
    %v162 = vsub.s32 %v159, %v161
    %v163 = vrot.slane %v145, %v162
    %v165 = vunpack.c.l.s4 1966171168
    %v166 = vunpack.c.0.s8 %v165
    %v167 = vlaneseq
    %v168 = vshrl.u32 %v167, 7
    %v169 = vsub.s32 %v166, %v168
    %v170 = vrot.slane %v163, %v169
    %171 = vrot.lane.b32.xlu0 %v170, 32
    %v172 = vpop.permute.xlu0 %171
    %v174 = vmul.f32 %v144, %v172
    %v175 = vadd.f32 %v147, %v174
    %v176 = vxor.u32 %v175, 2147483648
    %v177 = vmul.f32 %v176, 1.442695
    %v178 = vpow.pop %v177
    %v179 = vadd.f32 %v178, 1.0
    %v180 = vrcp.pop %v179
    %v181 = vmul.f32 1.0, %v180
    %182 = vrot.lane.b32.xlu0 %v170, 64
    %v183 = vpop.permute.xlu0 %182
    %v185 = vmul.f32 %v144, %v183
    %v186 = vadd.f32 %v147, %v185
    %v187 = vxor.u32 %v186, 2147483648
    %v188 = vmul.f32 %v187, 1.442695
    %v189 = vpow.pop %v188
    %v190 = vadd.f32 %v189, 1.0
    %v191 = vrcp.pop %v190
    %v192 = vmul.f32 1.0, %v191
    %193 = vrot.lane.b32.xlu0 %v170, 96
    %v194 = vpop.permute.xlu0 %193
    %v196 = vmul.f32 %v144, %v194
    %v197 = vadd.f32 %v147, %v196
    %v198 = vtanh.pop %v197
    %v199 = vmul.f32 %v155, %v146
    %201 = vrot.lane.b32.xlu0 %v198, 64
    %v202 = vpop.permute.xlu0 %201
    %v204 = vmul.f32 %v181, %v202
    %206 = vrot.lane.b32.xlu0 %v204, 96
    %v207 = vpop.permute.xlu0 %206
    %v209 = vadd.f32 %v199, %v207
    %v210 = vtanh.pop %v209
    %212 = vrot.lane.b32.xlu0 %v210, 64
    %v213 = vpop.permute.xlu0 %212
    %v215 = vmul.f32 %v192, %v213
    %217 = vrot.lane.b32.xlu0 %v215, 64
    %v218 = vpop.permute.xlu0 %217
    %221 = vrot.lane.b32.xlu0 %v209, 32
    %v222 = vpop.permute.xlu0 %221
    %vm224 = vcmask 261120
    %v225 = vsel %vm224, %v218, %v222
    %vm226 = vcmask 516096
    %227 = vst.msk [vmem:[#allocation9] sm:$0x1] %vm226, %v225
    %v229 = vunpack.c.l.s4 1966171168
    %v230 = vunpack.c.0.s8 %v229
    %v231 = vlaneseq
    %v232 = vshrl.u32 %v231, 7
    %v233 = vsub.s32 %v230, %v232
    %v234 = vrot.slane %v215, %v233
    %v236 = vunpack.c.l.s4 1966171168
    %v237 = vunpack.c.0.s8 %v236
    %v238 = vlaneseq
    %v239 = vshrl.u32 %v238, 7
    %v240 = vsub.s32 %v237, %v239
    %v241 = vrot.slane %v234, %v240
    %242 = vrot.lane.b32.xlu0 %v241, 64
    %v243 = vpop.permute.xlu0 %242
    %v245 = vmul.f32 %v144, %v243
    %v247 = vlaneseq
    %v248 = vshrl.u32 %v247, 7
    %v249 = vsub.s32 0, %v248
    %v250 = vrot.slane %v245, %v249
    %v252 = vadd.f32 %v147, %v250
    %v253 = vxor.u32 %v252, 2147483648
    %v254 = vmul.f32 %v253, 1.442695
    %v255 = vpow.pop %v254
    %v256 = vadd.f32 %v255, 1.0
    %v257 = vrcp.pop %v256
    %v258 = vmul.f32 1.0, %v257
    %259 = vrot.lane.b32.xlu0 %v241, 96
    %v260 = vpop.permute.xlu0 %259
    %v262 = vmul.f32 %v144, %v260
    %v264 = vlaneseq
    %v265 = vshrl.u32 %v264, 7
    %v266 = vsub.s32 0, %v265
    %v267 = vrot.slane %v262, %v266
    %v269 = vadd.f32 %v147, %v267
    %v270 = vxor.u32 %v269, 2147483648
    %v271 = vmul.f32 %v270, 1.442695
    %v272 = vpow.pop %v271
    %v273 = vadd.f32 %v272, 1.0
    %v274 = vrcp.pop %v273
    %v275 = vmul.f32 1.0, %v274
    %v276 = vmul.f32 %v144, %v215
    %v278 = vlaneseq
    %v279 = vshrl.u32 %v278, 7
    %v280 = vsub.s32 0, %v279
    %v281 = vrot.slane %v276, %v280
    %v283 = vadd.f32 %v147, %v281
    %v284 = vxor.u32 %v283, 2147483648
    %v285 = vmul.f32 %v284, 1.442695
    %v286 = vpow.pop %v285
    %v287 = vadd.f32 %v286, 1.0
    %v288 = vrcp.pop %v287
    %v289 = vmul.f32 1.0, %v288
    %290 = vrot.lane.b32.xlu0 %v241, 32
    %v291 = vpop.permute.xlu0 %290
    %v293 = vmul.f32 %v144, %v291
    %v295 = vlaneseq
    %v296 = vshrl.u32 %v295, 7
    %v297 = vsub.s32 0, %v296
    %v298 = vrot.slane %v293, %v297
    %v300 = vadd.f32 %v147, %v298
    %v301 = vtanh.pop %v300
    %v302 = vrot.slane %v209, 7
    %v304 = vmul.f32 %v258, %v302
    %306 = vrot.lane.b32.xlu0 %v301, 64
    %v307 = vpop.permute.xlu0 %306
    %v309 = vmul.f32 %v275, %v307
    %311 = vrot.lane.b32.xlu0 %v309, 96
    %v312 = vpop.permute.xlu0 %311
    %v314 = vadd.f32 %v304, %v312
    %v315 = vtanh.pop %v314
    %317 = vrot.lane.b32.xlu0 %v315, 64
    %v318 = vpop.permute.xlu0 %317
    %v320 = vmul.f32 %v289, %v318
    %322 = vrot.lane.b32.xlu0 %v320, 64
    %v323 = vpop.permute.xlu0 %322
    %326 = vrot.lane.b32.xlu0 %v314, 32
    %v327 = vpop.permute.xlu0 %326
    %v329 = vsel %vm224, %v323, %v327
    %s330 = sadd.s32 0, 1
    %s331 = scalar_lea.vmem [#allocation9], %s330
    %vm332 = vcmask 517121
    %333 = vst.msk [vmem:[%s331 - $0x1] sm:$0x2] %vm332, %v329
    %v335 = vunpack.c.l.s4 1966171168
    %v336 = vunpack.c.0.s8 %v335
    %v337 = vlaneseq
    %v338 = vshrl.u32 %v337, 7
    %v339 = vsub.s32 %v336, %v338
    %v340 = vrot.slane %v320, %v339
    %v341 = vcombine.high %v340, %v340
    %v343 = vunpack.c.l.s4 1966171168
    %v344 = vunpack.c.0.s8 %v343
    %v345 = vlaneseq
    %v346 = vshrl.u32 %v345, 7
    %v347 = vsub.s32 %v344, %v346
    %v348 = vrot.slane %v341, %v347
    %349 = vrot.lane.b32.xlu0 %v348, 64
    %v350 = vpop.permute.xlu0 %349
    %v352 = vmul.f32 %v144, %v350
    %v354 = vlaneseq
    %v355 = vshrl.u32 %v354, 7
    %v356 = vsub.s32 0, %v355
    %v357 = vrot.slane %v352, %v356
    %v359 = vadd.f32 %v147, %v357
    %v360 = vxor.u32 %v359, 2147483648
    %v361 = vmul.f32 %v360, 1.442695
    %v362 = vpow.pop %v361
    %v363 = vadd.f32 %v362, 1.0
    %v364 = vrcp.pop %v363
    %v365 = vmul.f32 1.0, %v364
    %366 = vrot.lane.b32.xlu0 %v348, 96
    %v367 = vpop.permute.xlu0 %366
    %v369 = vmul.f32 %v144, %v367
    %v371 = vlaneseq
    %v372 = vshrl.u32 %v371, 7
    %v373 = vsub.s32 0, %v372
    %v374 = vrot.slane %v369, %v373
    %v376 = vadd.f32 %v147, %v374
    %v377 = vxor.u32 %v376, 2147483648
    %v378 = vmul.f32 %v377, 1.442695
    %v379 = vpow.pop %v378
    %v380 = vadd.f32 %v379, 1.0
    %v381 = vrcp.pop %v380
    %v382 = vmul.f32 1.0, %v381
    %v384 = vmul.f32 %v144, %v348
    %v386 = vlaneseq
    %v387 = vshrl.u32 %v386, 7
    %v388 = vsub.s32 0, %v387
    %v389 = vrot.slane %v384, %v388
    %v391 = vadd.f32 %v147, %v389
    %v392 = vxor.u32 %v391, 2147483648
    %v393 = vmul.f32 %v392, 1.442695
    %v394 = vpow.pop %v393
    %v395 = vadd.f32 %v394, 1.0
    %v396 = vrcp.pop %v395
    %v397 = vmul.f32 1.0, %v396
    %398 = vrot.lane.b32.xlu0 %v348, 32
    %v399 = vpop.permute.xlu0 %398
    %v401 = vmul.f32 %v144, %v399
    %v403 = vlaneseq
    %v404 = vshrl.u32 %v403, 7
    %v405 = vsub.s32 0, %v404
    %v406 = vrot.slane %v401, %v405
    %v408 = vadd.f32 %v147, %v406
    %v409 = vtanh.pop %v408
    %v410 = vrot.slane %v314, 7
    %v412 = vmul.f32 %v365, %v410
    %414 = vrot.lane.b32.xlu0 %v409, 64
    %v415 = vpop.permute.xlu0 %414
    %v417 = vmul.f32 %v382, %v415
    %419 = vrot.lane.b32.xlu0 %v417, 96
    %v420 = vpop.permute.xlu0 %419
    %v422 = vadd.f32 %v412, %v420
    %v423 = vtanh.pop %v422
    %425 = vrot.lane.b32.xlu0 %v423, 64
    %v426 = vpop.permute.xlu0 %425
    %v428 = vmul.f32 %v397, %v426
    %430 = vrot.lane.b32.xlu0 %v428, 64
    %v431 = vpop.permute.xlu0 %430
    %434 = vrot.lane.b32.xlu0 %v422, 32
    %v435 = vpop.permute.xlu0 %434
    %v437 = vsel %vm224, %v431, %v435
    %s438 = sadd.s32 0, 2
    %s439 = scalar_lea.vmem [#allocation9], %s438
    %vm440 = vcmask 518146
    %441 = vst.msk [vmem:[%s439 - $0x2] sm:$0x4] %vm440, %v437
    %v443 = vunpack.c.l.s4 1966171168
    %v444 = vunpack.c.0.s8 %v443
    %v445 = vlaneseq
    %v446 = vshrl.u32 %v445, 7
    %v447 = vsub.s32 %v444, %v446
    %v448 = vrot.slane %v428, %v447
    %v450 = vunpack.c.l.s4 1966171168
    %v451 = vunpack.c.0.s8 %v450
    %v452 = vlaneseq
    %v453 = vshrl.u32 %v452, 7
    %v454 = vsub.s32 %v451, %v453
    %v455 = vrot.slane %v448, %v454
    %v456 = vcombine.high %v455, %v455
    %457 = vrot.lane.b32.xlu0 %v456, 64
    %v458 = vpop.permute.xlu0 %457
    %v460 = vmul.f32 %v144, %v458
    %v462 = vlaneseq
    %v463 = vshrl.u32 %v462, 7
    %v464 = vsub.s32 0, %v463
    %v465 = vrot.slane %v460, %v464
    %v467 = vadd.f32 %v147, %v465
    %v468 = vxor.u32 %v467, 2147483648
    %v469 = vmul.f32 %v468, 1.442695
    %v470 = vpow.pop %v469
    %v471 = vadd.f32 %v470, 1.0
    %v472 = vrcp.pop %v471
    %v473 = vmul.f32 1.0, %v472
    %474 = vrot.lane.b32.xlu0 %v456, 96
    %v475 = vpop.permute.xlu0 %474
    %v477 = vmul.f32 %v144, %v475
    %v479 = vlaneseq
    %v480 = vshrl.u32 %v479, 7
    %v481 = vsub.s32 0, %v480
    %v482 = vrot.slane %v477, %v481
    %v484 = vadd.f32 %v147, %v482
    %v485 = vxor.u32 %v484, 2147483648
    %v486 = vmul.f32 %v485, 1.442695
    %v487 = vpow.pop %v486
    %v488 = vadd.f32 %v487, 1.0
    %v489 = vrcp.pop %v488
    %v490 = vmul.f32 1.0, %v489
    %v492 = vmul.f32 %v144, %v456
    %v494 = vlaneseq
    %v495 = vshrl.u32 %v494, 7
    %v496 = vsub.s32 0, %v495
    %v497 = vrot.slane %v492, %v496
    %v499 = vadd.f32 %v147, %v497
    %v500 = vxor.u32 %v499, 2147483648
    %v501 = vmul.f32 %v500, 1.442695
    %v502 = vpow.pop %v501
    %v503 = vadd.f32 %v502, 1.0
    %v504 = vrcp.pop %v503
    %v505 = vmul.f32 1.0, %v504
    %506 = vrot.lane.b32.xlu0 %v456, 32
    %v507 = vpop.permute.xlu0 %506
    %v509 = vmul.f32 %v144, %v507
    %v511 = vlaneseq
    %v512 = vshrl.u32 %v511, 7
    %v513 = vsub.s32 0, %v512
    %v514 = vrot.slane %v509, %v513
    %v516 = vadd.f32 %v147, %v514
    %v517 = vtanh.pop %v516
    %v518 = vrot.slane %v422, 7
    %v520 = vmul.f32 %v473, %v518
    %522 = vrot.lane.b32.xlu0 %v517, 64
    %v523 = vpop.permute.xlu0 %522
    %v525 = vmul.f32 %v490, %v523
    %527 = vrot.lane.b32.xlu0 %v525, 96
    %v528 = vpop.permute.xlu0 %527
    %v530 = vadd.f32 %v520, %v528
    %v531 = vtanh.pop %v530
    %533 = vrot.lane.b32.xlu0 %v531, 64
    %v534 = vpop.permute.xlu0 %533
    %v536 = vmul.f32 %v505, %v534
    %538 = vrot.lane.b32.xlu0 %v536, 64
    %v539 = vpop.permute.xlu0 %538
    %542 = vrot.lane.b32.xlu0 %v530, 32
    %v543 = vpop.permute.xlu0 %542
    %v545 = vsel %vm224, %v539, %v543
    %s546 = sadd.s32 0, 3
    %s547 = scalar_lea.vmem [#allocation9], %s546
    %vm548 = vcmask 519171
    %549 = vst.msk [vmem:[%s547 - $0x3] sm:$0x8] %vm548, %v545
    %v551 = vunpack.c.l.s4 1966171168
    %v552 = vunpack.c.0.s8 %v551
    %v553 = vlaneseq
    %v554 = vshrl.u32 %v553, 7
    %v555 = vsub.s32 %v552, %v554
    %v556 = vrot.slane %v536, %v555
    %v557 = vcombine.high %v556, %v556
    %v559 = vunpack.c.l.s4 1966171168
    %v560 = vunpack.c.0.s8 %v559
    %v561 = vlaneseq
    %v562 = vshrl.u32 %v561, 7
    %v563 = vsub.s32 %v560, %v562
    %v564 = vrot.slane %v557, %v563
    %v565 = vcombine.high %v564, %v564
    %566 = vrot.lane.b32.xlu0 %v565, 64
    %v567 = vpop.permute.xlu0 %566
    %v569 = vmul.f32 %v144, %v567
    %v571 = vlaneseq
    %v572 = vshrl.u32 %v571, 7
    %v573 = vsub.s32 0, %v572
    %v574 = vrot.slane %v569, %v573
    %v576 = vadd.f32 %v147, %v574
    %v577 = vxor.u32 %v576, 2147483648
    %v578 = vmul.f32 %v577, 1.442695
    %v579 = vpow.pop %v578
    %v580 = vadd.f32 %v579, 1.0
    %v581 = vrcp.pop %v580
    %v582 = vmul.f32 1.0, %v581
    %583 = vrot.lane.b32.xlu0 %v565, 96
    %v584 = vpop.permute.xlu0 %583
    %v586 = vmul.f32 %v144, %v584
    %v588 = vlaneseq
    %v589 = vshrl.u32 %v588, 7
    %v590 = vsub.s32 0, %v589
    %v591 = vrot.slane %v586, %v590
    %v593 = vadd.f32 %v147, %v591
    %v594 = vxor.u32 %v593, 2147483648
    %v595 = vmul.f32 %v594, 1.442695
    %v596 = vpow.pop %v595
    %v597 = vadd.f32 %v596, 1.0
    %v598 = vrcp.pop %v597
    %v599 = vmul.f32 1.0, %v598
    %v601 = vmul.f32 %v144, %v565
    %v603 = vlaneseq
    %v604 = vshrl.u32 %v603, 7
    %v605 = vsub.s32 0, %v604
    %v606 = vrot.slane %v601, %v605
    %v608 = vadd.f32 %v147, %v606
    %v609 = vxor.u32 %v608, 2147483648
    %v610 = vmul.f32 %v609, 1.442695
    %v611 = vpow.pop %v610
    %v612 = vadd.f32 %v611, 1.0
    %v613 = vrcp.pop %v612
    %v614 = vmul.f32 1.0, %v613
    %615 = vrot.lane.b32.xlu0 %v565, 32
    %v616 = vpop.permute.xlu0 %615
    %v618 = vmul.f32 %v144, %v616
    %v620 = vlaneseq
    %v621 = vshrl.u32 %v620, 7
    %v622 = vsub.s32 0, %v621
    %v623 = vrot.slane %v618, %v622
    %v625 = vadd.f32 %v147, %v623
    %v626 = vtanh.pop %v625
    %v627 = vrot.slane %v530, 7
    %v629 = vmul.f32 %v582, %v627
    %631 = vrot.lane.b32.xlu0 %v626, 64
    %v632 = vpop.permute.xlu0 %631
    %v634 = vmul.f32 %v599, %v632
    %636 = vrot.lane.b32.xlu0 %v634, 96
    %v637 = vpop.permute.xlu0 %636
    %v639 = vadd.f32 %v629, %v637
    %v640 = vtanh.pop %v639
    %642 = vrot.lane.b32.xlu0 %v640, 64
    %v643 = vpop.permute.xlu0 %642
    %v645 = vmul.f32 %v614, %v643
    %647 = vrot.lane.b32.xlu0 %v645, 64
    %v648 = vpop.permute.xlu0 %647
    %651 = vrot.lane.b32.xlu0 %v639, 32
    %v652 = vpop.permute.xlu0 %651
    %v654 = vsel %vm224, %v648, %v652
    %s655 = sadd.s32 0, 4
    %s656 = scalar_lea.vmem [#allocation9], %s655
    %vm657 = vcmask 520196
    %658 = vst.msk [vmem:[%s656 - $0x4] sm:$0x10] %vm657, %v654
    %v659 = vcombine.high %v645, %v645
    %v661 = vunpack.c.l.s4 1966171168
    %v662 = vunpack.c.0.s8 %v661
    %v663 = vlaneseq
    %v664 = vshrl.u32 %v663, 7
    %v665 = vsub.s32 %v662, %v664
    %v666 = vrot.slane %v659, %v665
    %v668 = vunpack.c.l.s4 1966171168
    %v669 = vunpack.c.0.s8 %v668
    %v670 = vlaneseq
    %v671 = vshrl.u32 %v670, 7
    %v672 = vsub.s32 %v669, %v671
    %v673 = vrot.slane %v666, %v672
    %674 = vrot.lane.b32.xlu0 %v673, 64
    %v675 = vpop.permute.xlu0 %674
    %v677 = vmul.f32 %v144, %v675
    %v679 = vlaneseq
    %v680 = vshrl.u32 %v679, 7
    %v681 = vsub.s32 0, %v680
    %v682 = vrot.slane %v677, %v681
    %v684 = vadd.f32 %v147, %v682
    %v685 = vxor.u32 %v684, 2147483648
    %v686 = vmul.f32 %v685, 1.442695
    %v687 = vpow.pop %v686
    %v688 = vadd.f32 %v687, 1.0
    %v689 = vrcp.pop %v688
    %v690 = vmul.f32 1.0, %v689
    %691 = vrot.lane.b32.xlu0 %v673, 96
    %v692 = vpop.permute.xlu0 %691
    %v694 = vmul.f32 %v144, %v692
    %v696 = vlaneseq
    %v697 = vshrl.u32 %v696, 7
    %v698 = vsub.s32 0, %v697
    %v699 = vrot.slane %v694, %v698
    %v701 = vadd.f32 %v147, %v699
    %v702 = vxor.u32 %v701, 2147483648
    %v703 = vmul.f32 %v702, 1.442695
    %v704 = vpow.pop %v703
    %v705 = vadd.f32 %v704, 1.0
    %v706 = vrcp.pop %v705
    %v707 = vmul.f32 1.0, %v706
    %v709 = vmul.f32 %v144, %v673
    %v711 = vlaneseq
    %v712 = vshrl.u32 %v711, 7
    %v713 = vsub.s32 0, %v712
    %v714 = vrot.slane %v709, %v713
    %v716 = vadd.f32 %v147, %v714
    %v717 = vxor.u32 %v716, 2147483648
    %v718 = vmul.f32 %v717, 1.442695
    %v719 = vpow.pop %v718
    %v720 = vadd.f32 %v719, 1.0
    %v721 = vrcp.pop %v720
    %v722 = vmul.f32 1.0, %v721
    %723 = vrot.lane.b32.xlu0 %v673, 32
    %v724 = vpop.permute.xlu0 %723
    %v726 = vmul.f32 %v144, %v724
    %v728 = vlaneseq
    %v729 = vshrl.u32 %v728, 7
    %v730 = vsub.s32 0, %v729
    %v731 = vrot.slane %v726, %v730
    %v733 = vadd.f32 %v147, %v731
    %v734 = vtanh.pop %v733
    %v735 = vrot.slane %v639, 7
    %v737 = vmul.f32 %v690, %v735
    %739 = vrot.lane.b32.xlu0 %v734, 64
    %v740 = vpop.permute.xlu0 %739
    %v742 = vmul.f32 %v707, %v740
    %744 = vrot.lane.b32.xlu0 %v742, 96
    %v745 = vpop.permute.xlu0 %744
    %v747 = vadd.f32 %v737, %v745
    %v748 = vtanh.pop %v747
    %750 = vrot.lane.b32.xlu0 %v748, 64
    %v751 = vpop.permute.xlu0 %750
    %v753 = vmul.f32 %v722, %v751
    %755 = vrot.lane.b32.xlu0 %v753, 64
    %v756 = vpop.permute.xlu0 %755
    %759 = vrot.lane.b32.xlu0 %v747, 32
    %v760 = vpop.permute.xlu0 %759
    %v762 = vsel %vm224, %v756, %v760
    %s763 = sadd.s32 0, 5
    %s764 = scalar_lea.vmem [#allocation9], %s763
    %vm765 = vcmask 521221
    %766 = vst.msk [vmem:[%s764 - $0x5] sm:$0x20] %vm765, %v762
    %v767 = vcombine.high %v753, %v753
    %v769 = vunpack.c.l.s4 1966171168
    %v770 = vunpack.c.0.s8 %v769
    %v771 = vlaneseq
    %v772 = vshrl.u32 %v771, 7
    %v773 = vsub.s32 %v770, %v772
    %v774 = vrot.slane %v767, %v773
    %v775 = vcombine.high %v774, %v774
    %v777 = vunpack.c.l.s4 1966171168
    %v778 = vunpack.c.0.s8 %v777
    %v779 = vlaneseq
    %v780 = vshrl.u32 %v779, 7
    %v781 = vsub.s32 %v778, %v780
    %v782 = vrot.slane %v775, %v781
    %783 = vrot.lane.b32.xlu0 %v782, 64
    %v784 = vpop.permute.xlu0 %783
    %v786 = vmul.f32 %v144, %v784
    %v788 = vlaneseq
    %v789 = vshrl.u32 %v788, 7
    %v790 = vsub.s32 0, %v789
    %v791 = vrot.slane %v786, %v790
    %v793 = vadd.f32 %v147, %v791
    %v794 = vxor.u32 %v793, 2147483648
    %v795 = vmul.f32 %v794, 1.442695
    %v796 = vpow.pop %v795
    %v797 = vadd.f32 %v796, 1.0
    %v798 = vrcp.pop %v797
    %v799 = vmul.f32 1.0, %v798
    %800 = vrot.lane.b32.xlu0 %v782, 96
    %v801 = vpop.permute.xlu0 %800
    %v803 = vmul.f32 %v144, %v801
    %v805 = vlaneseq
    %v806 = vshrl.u32 %v805, 7
    %v807 = vsub.s32 0, %v806
    %v808 = vrot.slane %v803, %v807
    %v810 = vadd.f32 %v147, %v808
    %v811 = vxor.u32 %v810, 2147483648
    %v812 = vmul.f32 %v811, 1.442695
    %v813 = vpow.pop %v812
    %v814 = vadd.f32 %v813, 1.0
    %v815 = vrcp.pop %v814
    %v816 = vmul.f32 1.0, %v815
    %v818 = vmul.f32 %v144, %v782
    %v820 = vlaneseq
    %v821 = vshrl.u32 %v820, 7
    %v822 = vsub.s32 0, %v821
    %v823 = vrot.slane %v818, %v822
    %v825 = vadd.f32 %v147, %v823
    %v826 = vxor.u32 %v825, 2147483648
    %v827 = vmul.f32 %v826, 1.442695
    %v828 = vpow.pop %v827
    %v829 = vadd.f32 %v828, 1.0
    %v830 = vrcp.pop %v829
    %v831 = vmul.f32 1.0, %v830
    %832 = vrot.lane.b32.xlu0 %v782, 32
    %v833 = vpop.permute.xlu0 %832
    %v835 = vmul.f32 %v144, %v833
    %v837 = vlaneseq
    %v838 = vshrl.u32 %v837, 7
    %v839 = vsub.s32 0, %v838
    %v840 = vrot.slane %v835, %v839
    %v842 = vadd.f32 %v147, %v840
    %v843 = vtanh.pop %v842
    %v844 = vrot.slane %v747, 7
    %v846 = vmul.f32 %v799, %v844
    %848 = vrot.lane.b32.xlu0 %v843, 64
    %v849 = vpop.permute.xlu0 %848
    %v851 = vmul.f32 %v816, %v849
    %853 = vrot.lane.b32.xlu0 %v851, 96
    %v854 = vpop.permute.xlu0 %853
    %v856 = vadd.f32 %v846, %v854
    %v857 = vtanh.pop %v856
    %859 = vrot.lane.b32.xlu0 %v857, 64
    %v860 = vpop.permute.xlu0 %859
    %v862 = vmul.f32 %v831, %v860
    %864 = vrot.lane.b32.xlu0 %v862, 64
    %v865 = vpop.permute.xlu0 %864
    %868 = vrot.lane.b32.xlu0 %v856, 32
    %v869 = vpop.permute.xlu0 %868
    %v871 = vsel %vm224, %v865, %v869
    %s872 = sadd.s32 0, 6
    %s873 = scalar_lea.vmem [#allocation9], %s872
    %vm874 = vcmask 522246
    %875 = vst.msk [vmem:[%s873 - $0x6] sm:$0x40] %vm874, %v871
    %v876 = vcombine.high %v862, %v862
    %v878 = vunpack.c.l.s4 1966171168
    %v879 = vunpack.c.0.s8 %v878
    %v880 = vlaneseq
    %v881 = vshrl.u32 %v880, 7
    %v882 = vsub.s32 %v879, %v881
    %v883 = vrot.slane %v876, %v882
    %v885 = vunpack.c.l.s4 1966171168
    %v886 = vunpack.c.0.s8 %v885
    %v887 = vlaneseq
    %v888 = vshrl.u32 %v887, 7
    %v889 = vsub.s32 %v886, %v888
    %v890 = vrot.slane %v883, %v889
    %v891 = vcombine.high %v890, %v890
    %892 = vrot.lane.b32.xlu0 %v891, 64
    %v893 = vpop.permute.xlu0 %892
    %v895 = vmul.f32 %v144, %v893
    %v897 = vlaneseq
    %v898 = vshrl.u32 %v897, 7
    %v899 = vsub.s32 0, %v898
    %v900 = vrot.slane %v895, %v899
    %v902 = vadd.f32 %v147, %v900
    %v903 = vxor.u32 %v902, 2147483648
    %v904 = vmul.f32 %v903, 1.442695
    %v905 = vpow.pop %v904
    %v906 = vadd.f32 %v905, 1.0
    %v907 = vrcp.pop %v906
    %v908 = vmul.f32 1.0, %v907
    %909 = vrot.lane.b32.xlu0 %v891, 96
    %v910 = vpop.permute.xlu0 %909
    %v912 = vmul.f32 %v144, %v910
    %v914 = vlaneseq
    %v915 = vshrl.u32 %v914, 7
    %v916 = vsub.s32 0, %v915
    %v917 = vrot.slane %v912, %v916
    %v919 = vadd.f32 %v147, %v917
    %v920 = vxor.u32 %v919, 2147483648
    %v921 = vmul.f32 %v920, 1.442695
    %v922 = vpow.pop %v921
    %v923 = vadd.f32 %v922, 1.0
    %v924 = vrcp.pop %v923
    %v925 = vmul.f32 1.0, %v924
    %v927 = vmul.f32 %v144, %v891
    %v929 = vlaneseq
    %v930 = vshrl.u32 %v929, 7
    %v931 = vsub.s32 0, %v930
    %v932 = vrot.slane %v927, %v931
    %v934 = vadd.f32 %v147, %v932
    %v935 = vxor.u32 %v934, 2147483648
    %v936 = vmul.f32 %v935, 1.442695
    %v937 = vpow.pop %v936
    %v938 = vadd.f32 %v937, 1.0
    %v939 = vrcp.pop %v938
    %v940 = vmul.f32 1.0, %v939
    %941 = vrot.lane.b32.xlu0 %v891, 32
    %v942 = vpop.permute.xlu0 %941
    %v944 = vmul.f32 %v144, %v942
    %v946 = vlaneseq
    %v947 = vshrl.u32 %v946, 7
    %v948 = vsub.s32 0, %v947
    %v949 = vrot.slane %v944, %v948
    %v951 = vadd.f32 %v147, %v949
    %v952 = vtanh.pop %v951
    %v953 = vrot.slane %v856, 7
    %v955 = vmul.f32 %v908, %v953
    %957 = vrot.lane.b32.xlu0 %v952, 64
    %v958 = vpop.permute.xlu0 %957
    %v960 = vmul.f32 %v925, %v958
    %962 = vrot.lane.b32.xlu0 %v960, 96
    %v963 = vpop.permute.xlu0 %962
    %v965 = vadd.f32 %v955, %v963
    %v966 = vtanh.pop %v965
    %968 = vrot.lane.b32.xlu0 %v966, 64
    %v969 = vpop.permute.xlu0 %968
    %v971 = vmul.f32 %v940, %v969
    %973 = vrot.lane.b32.xlu0 %v971, 64
    %v974 = vpop.permute.xlu0 %973
    %977 = vrot.lane.b32.xlu0 %v965, 32
    %v978 = vpop.permute.xlu0 %977
    %v980 = vsel %vm224, %v974, %v978
    %s981 = sadd.s32 0, 7
    %s982 = scalar_lea.vmem [#allocation9], %s981
    %vm983 = vcmask 523271
    %984 = vst.msk [vmem:[%s982 - $0x7] sm:$0x80] %vm983, %v980
    %vm985 = vcmask 261127
    %986 = vst.msk [vmem:[#allocation2 - $0x7] sm:$0x80] %vm985, %v974
    %987 = vst.msk [vmem:[#allocation2 - $0x6] sm:$0x80] %vm985, %v965
    // Predicated region
    $region38: #{tpu_custom_call.1} parent=1 // pred_check
      _
    $region39: #{tpu_custom_call.1} parent=1 // pred_check_branch
      %989 = sbr.rel (0) target = $region41
    $region40: #{tpu_custom_call.1} parent=1 // pred_region
      %s991 = ssub.s32 128, 128
      %992 = vsyncadd [#allocation6], %s991
      %s994 = sshll.u32 [#allocation9], 4
      %s995 = int_to_ptr.vmem [resolvable:$true] %s994
      %997 = dma.vmem_to_hbm [thread:$0]  %s995, 128, %s6, [#allocation6]
    $region41: #{tpu_custom_call.1} parent=1 // pred_fallthru
      _
    // Predicated region
    $region42: #{tpu_custom_call.1} parent=1 // pred_check
      _
    $region43: #{tpu_custom_call.1} parent=1 // pred_check_branch
      %999 = sbr.rel (0) target = $region45
    $region44: #{tpu_custom_call.1} parent=1 // pred_region
      %1000 = dma.done [#allocation6], 128
    $region45: #{tpu_custom_call.1} parent=1 // pred_fallthru
      _
    %1001 = vsyncpa [#allocation5], 1
    %1002 = vsyncpa [#allocation8], 1
    %1003 = vsyncpa [#allocation6], 1

</llo_original>
